<compile_context>
chip_gen: v6e
topology: v6e:2x2x1
jax: 0.10.0
libtpu: 0.0.40
codegen_flags: <defaults>
</compile_context>

<pallas_src>
import jax
import jax.numpy as jnp
from jax.experimental import pallas as pl
from jax.experimental.pallas import tpu as pltpu


def _round_up(a: int, m: int) -> int:
    return (a + m - 1) // m * m


# ---------------------------------------------------------------------------
# Kernels
# ---------------------------------------------------------------------------
def _pca_matmul_kernel(x_ref, w_ref, o_ref):
    # x_ref: (TM, HW) batch tile, w_ref: (HW, L) VMEM-resident weight,
    # o_ref: (TM, L) output tile (L = full array dim, masked stores are fine
    # here: output bytes are ~1/8 of the x bytes).
    o_ref[...] = jnp.dot(
        x_ref[...], w_ref[...], preferred_element_type=jnp.float32
    ).astype(o_ref.dtype)


def _pca_matmul_ksplit_kernel(x_ref, w_ref, o_ref, acc_ref):
    # Grid = (batch tiles, K tiles).  K axis is "arbitrary": accumulate in an
    # f32 VMEM scratch, init on first K step, store on last.
    k = pl.program_id(1)

    @pl.when(k == 0)
    def _init():
        acc_ref[...] = jnp.zeros_like(acc_ref)

    acc_ref[...] += jnp.dot(
        x_ref[...], w_ref[...], preferred_element_type=jnp.float32
    )

    @pl.when(k == pl.num_programs(1) - 1)
    def _store():
        o_ref[...] = acc_ref[...].astype(o_ref.dtype)


# ---------------------------------------------------------------------------
# Tiling helpers
# ---------------------------------------------------------------------------
def _pick_batch_tile(B, bytes_per_row_pipelined, fixed_bytes, budget, tm_max):
    """Largest multiple-of-8 batch tile whose pipelined buffers fit `budget`."""
    avail = max(budget - fixed_bytes, 8 * bytes_per_row_pipelined)
    tm_fit = max(8, (avail // max(bytes_per_row_pipelined, 1)) // 8 * 8)
    return max(8, min(tm_max, _round_up(B, 8), tm_fit))


def _pick_k_tile(HW, L, w_itemsize, limit_bytes):
    """Largest multiple of 128 that divides HW and whose (double-buffered)
    weight slab fits `limit_bytes`. None if no such tile exists."""
    best = None
    for tk in range(128, HW + 1, 128):
        if HW % tk == 0 and 2 * tk * L * w_itemsize <= limit_bytes:
            best = tk
    return best


# ---------------------------------------------------------------------------
# Public wrapper (== PCAEncoder.forward)
# ---------------------------------------------------------------------------
def pca_encoder_forward(
    batch_kernel: jax.Array,
    weight: jax.Array,
    *,
    tm_max: int = 1024,
    vmem_budget_bytes: int = 24 << 20,          # pipelined-buffer budget
    max_resident_weight_bytes: int = 4 << 20,   # resident-weight guard (v7x)
    small_batch_threshold: int = 256,
    force_pallas: bool = False,
) -> jax.Array:
    """out = batch_kernel.reshape(B, H*W) @ weight, shape (B, L)."""
    B, H, W = batch_kernel.shape
    HW, L = weight.shape
    assert HW == H * W, "weight first dim must be H*W"

    x = batch_kernel.reshape(B, HW)
    out_dtype = batch_kernel.dtype

    # --- tiny batch: pallas_call fixed cost dominates, plain dot is faster ---
    if (not force_pallas) and B <= small_batch_threshold:
        return jnp.dot(x, weight, preferred_element_type=jnp.float32).astype(out_dtype)

    x_item = jnp.dtype(x.dtype).itemsize
    w_item = jnp.dtype(weight.dtype).itemsize
    o_item = jnp.dtype(out_dtype).itemsize

    vmem_limit = vmem_budget_bytes + (8 << 20)  # headroom; <= v7x 64 MiB default-safe
    cost = pl.CostEstimate(
        flops=2 * B * HW * L,
        transcendentals=0,
        bytes_accessed=B * HW * x_item + HW * L * w_item + B * L * o_item,
    )

    resident_w_bytes = 2 * HW * L * w_item  # weight slab, double-buffer worst case

    if resident_w_bytes <= max_resident_weight_bytes:
        # ---------------- resident-weight path (the common case) -------------
        per_row = 2 * (HW * x_item + L * o_item)  # double-buffered x + out rows
        TM = _pick_batch_tile(B, per_row, resident_w_bytes, vmem_budget_bytes, tm_max)

        return pl.pallas_call(
            _pca_matmul_kernel,
            out_shape=jax.ShapeDtypeStruct((B, L), out_dtype),
            grid_spec=pltpu.PrefetchScalarGridSpec(
                num_scalar_prefetch=0,
                grid=(pl.cdiv(B, TM),),
                in_specs=[
                    # x tiled over batch; last dim = full HW (no pad needed).
                    pl.BlockSpec((TM, HW), lambda i: (i, 0)),
                    # weight: constant block index -> stays VMEM-resident.
                    pl.BlockSpec((HW, L), lambda i: (0, 0)),
                ],
                out_specs=pl.BlockSpec((TM, L), lambda i: (i, 0)),
            ),
            compiler_params=pltpu.CompilerParams(
                dimension_semantics=("parallel",),
                vmem_limit_bytes=vmem_limit,
            ),
            cost_estimate=cost,
        )(x, weight)

    # ---------------- K-split path (weight too big to keep resident) ---------
    TK = _pick_k_tile(HW, L, w_item, max_resident_weight_bytes)
    if TK is None:
        # TODO(synk): padded-K Pallas path for HW not a multiple of 128 with a
        # huge weight; fall back to XLA (rare for PCA blur-kernel shapes).
        return jnp.dot(x, weight, preferred_element_type=jnp.float32).astype(out_dtype)

    w_chunk_bytes = 2 * TK * L * w_item
    per_row = 2 * (TK * x_item + L * o_item) + L * 4  # + f32 accumulator row
    TM = _pick_batch_tile(B, per_row, w_chunk_bytes, vmem_budget_bytes, tm_max)

    return pl.pallas_call(
        _pca_matmul_ksplit_kernel,
        out_shape=jax.ShapeDtypeStruct((B, L), out_dtype),
        grid_spec=pltpu.PrefetchScalarGridSpec(
            num_scalar_prefetch=0,
            grid=(pl.cdiv(B, TM), HW // TK),
            in_specs=[
                pl.BlockSpec((TM, TK), lambda i, k: (i, k)),
                pl.BlockSpec((TK, L), lambda i, k: (k, 0)),
            ],
            out_specs=pl.BlockSpec((TM, L), lambda i, k: (i, 0)),
            scratch_shapes=[pltpu.VMEM((TM, L), jnp.float32)],
        ),
        compiler_params=pltpu.CompilerParams(
            dimension_semantics=("parallel", "arbitrary"),
            vmem_limit_bytes=vmem_limit,
        ),
        cost_estimate=cost,
    )(x, weight)


# ---------------------------------------------------------------------------
# Self-test
# ---------------------------------------------------------------------------
if __name__ == "__main__":
    key = jax.random.PRNGKey(0)
    k_bk, k_w, k_big = jax.random.split(key, 3)

    # Small shapes consistent with the module: blur kernel 16x16, PCA dim 32.
    B, H, W, L = 2, 16, 16, 32
    batch_kernel = jax.random.normal(k_bk, (B, H, W), dtype=jnp.float32)
    weight = jax.random.normal(k_w, (H * W, L), dtype=jnp.float32) / jnp.sqrt(H * W)
    ref = batch_kernel.reshape(B, H * W) @ weight

    # 1) Default tiny-batch path (XLA bypass) — the module's usual B=2 case.
    out = jax.block_until_ready(pca_encoder_forward(batch_kernel, weight))
    assert out.shape == (B, L)
    assert jnp.allclose(out, ref, atol=1e-4, rtol=1e-4), "mismatch (bypass, B=2)"

    # 2) Pallas path forced at small batch (exercises ragged/partial batch tile).
    out_p = jax.block_until_ready(
        pca_encoder_forward(batch_kernel, weight, force_pallas=True)
    )
    assert jnp.allclose(out_p, ref, atol=1e-4, rtol=1e-4), "mismatch (pallas, B=2)"

    # 3) Multi-tile Pallas path: B=1030 -> TM=1024, grid=(2,), ragged last tile,
    #    no wrapper-side padding or slicing of x / output.
    B2 = 1030
    bk2 = jax.random.normal(k_big, (B2, H, W), dtype=jnp.float32)
    ref2 = bk2.reshape(B2, H * W) @ weight
    out2 = jax.block_until_ready(pca_encoder_forward(bk2, weight))
    assert out2.shape == (B2, L)
    assert jnp.allclose(out2, ref2, atol=1e-4, rtol=1e-4), "mismatch (pallas, B=1030)"

    # 4) K-split (v7x resident-weight guard) forced via a tiny resident limit:
    #    HW=256 split into TK=128 chunks, f32 accumulator, grid=(tiles, 2).
    out3 = jax.block_until_ready(
        pca_encoder_forward(bk2, weight, max_resident_weight_bytes=40_000)
    )
    assert jnp.allclose(out3, ref2, atol=1e-4, rtol=1e-4), "mismatch (k-split)"

    print("KERNEL_OK")
</pallas_src>

<mosaic_0001>
module attributes {stable_mosaic.version = 11 : i64} {
  func.func @_pca_matmul_kernel(%arg0: i32, %arg1: memref<8x256xf32, #tpu.memory_space<vmem>>, %arg2: memref<256x32xf32, #tpu.memory_space<vmem>>, %arg3: memref<8x32xf32, #tpu.memory_space<vmem>>) attributes {dimension_semantics = [#tpu.dimension_semantics<parallel>], iteration_bounds = array<i64: 1>, scalar_prefetch = 0 : i64, scratch_operands = 0 : i64, tpu.core_type = #tpu.core_type<tc>, window_params = [{transform_indices = @transform_0, window_bounds = array<i64: 8, 256>}, {pipeline_mode = #tpu.pipeline_mode<synchronous>, transform_indices = @transform_1, window_bounds = array<i64: 256, 32>}, {transform_indices = @transform_2, window_bounds = array<i64: 8, 32>}]} {
    %c0 = arith.constant 0 : index
    %c0_0 = arith.constant 0 : index
    %0 = vector.load %arg1[%c0, %c0_0] : memref<8x256xf32, #tpu.memory_space<vmem>>, vector<8x256xf32>
    %c0_1 = arith.constant 0 : index
    %c0_2 = arith.constant 0 : index
    %1 = vector.load %arg2[%c0_1, %c0_2] : memref<256x32xf32, #tpu.memory_space<vmem>>, vector<256x32xf32>
    %cst = arith.constant dense<0.000000e+00> : vector<8x32xf32>
    %2 = tpu.matmul %0, %1, %cst {dimension_numbers = #tpu.dot_dimension_numbers<[1], [0], [0], [1], [0, 0, 1, 1], [], []>} : vector<8x256xf32>, vector<256x32xf32>, vector<8x32xf32> -> vector<8x32xf32>
    %c0_3 = arith.constant 0 : index
    %c0_4 = arith.constant 0 : index
    %3 = vector.load %arg3[%c0_3, %c0_4] : memref<8x32xf32, #tpu.memory_space<vmem>>, vector<8x32xf32>
    tpu.vector_store %arg3[%c0_3, %c0_4], %2 {strides = array<i32>} : memref<8x32xf32, #tpu.memory_space<vmem>>, vector<8x32xf32>,
    return
  }
  func.func @transform_0(%arg0: i32) -> (i32, i32) {
    %c0_i32 = arith.constant 0 : i32
    %c0_i32_0 = arith.constant 0 : i32
    return %arg0, %c0_i32 : i32, i32
  }
  func.func @transform_1(%arg0: i32) -> (i32, i32) {
    %c0_i32 = arith.constant 0 : i32
    %c0_i32_0 = arith.constant 0 : i32
    %c0_i32_1 = arith.constant 0 : i32
    return %c0_i32, %c0_i32_0 : i32, i32
  }
  func.func @transform_2(%arg0: i32) -> (i32, i32) {
    %c0_i32 = arith.constant 0 : i32
    %c0_i32_0 = arith.constant 0 : i32
    return %arg0, %c0_i32 : i32, i32
  }
}

</mosaic_0001>

<llo_original>
// kernel: tpu_custom_call.1
$region0: #{tpu_custom_call.1}
  #allocation0 [shape = 'u32[]', space=smem, size = 0x4, offset = 0x4, fixed_abs, tag = 'smem constant byte address 0x4 - core index']
  #allocation1 [shape = 'u32[144,128]{1,0:T(1,128)}', space=vmem, size = 0x12000, scoped, tag = 'internal scratch']
  %s0 = inlined_call_operand.vmem [shape: f32[2,256], index: 0, kind: input, shape index: {}]
  %s1 = inlined_call_operand.vmem [shape: f32[256,32], index: 1, kind: input, shape index: {}]
  %s2 = inlined_call_operand.hbm [shape: f32[2,32], index: 2, kind: output, shape index: {}]
  %s3 = sld [smem:[#allocation0]]
  $region18: #{tpu_custom_call.1} parent=0
    _
  %s5 = ssub.s32 1, %s3
  %s6 = scalar_select 0, %s5, %s3
  $region1: #{tpu_custom_call.1} parent=0
    #allocation2 [shape = 'u8[4096]{0}', space=vmem, size = 0x1000, scoped, tag = 'output window, operand 0, single buffered']
    #allocation3 [shape = 's32[1]{0}', space=sflag, size = 0x4, scoped, tag = 'scoped memory for tpu_custom_call.1']
    %7 = vsyncpa [#allocation3], 0
    // Predicated region
    $region2: #{tpu_custom_call.1} parent=1 // pred_check
      _
    $region3: #{tpu_custom_call.1} parent=1 // pred_check_branch
      %9 = sbr.rel (0) target = $region5
    $region4: #{tpu_custom_call.1} parent=1 // pred_region
      _
    $region5: #{tpu_custom_call.1} parent=1 // pred_fallthru
      _
    // Predicated region
    $region6: #{tpu_custom_call.1} parent=1 // pred_check
      _
    $region7: #{tpu_custom_call.1} parent=1 // pred_check_branch
      %11 = sbr.rel (0) target = $region9
    $region8: #{tpu_custom_call.1} parent=1 // pred_region
      _
    $region9: #{tpu_custom_call.1} parent=1 // pred_fallthru
      _
    %v12 = vld [vmem:[%s0] sm:$0xf]
    %v13 = vld [vmem:[%s0 + $0x4] sm:$0xf]
    %v14 = vld [vmem:[%s0 + $0x8] sm:$0xf]
    %v15 = vld [vmem:[%s0 + $0xc] sm:$0xf]
    %v16 = vld [vmem:[%s1] sm:$0xff]
    %v17 = vld [vmem:[%s1 + $0x8] sm:$0xff]
    %v18 = vld [vmem:[%s1 + $0x10] sm:$0xff]
    %v19 = vld [vmem:[%s1 + $0x18] sm:$0xff]
    %v20 = vld [vmem:[%s1 + $0x20] sm:$0xff]
    %v21 = vld [vmem:[%s1 + $0x28] sm:$0xff]
    %v22 = vld [vmem:[%s1 + $0x30] sm:$0xff]
    %v23 = vld [vmem:[%s1 + $0x38] sm:$0xff]
    %v24 = vld [vmem:[%s1 + $0x40] sm:$0xff]
    %v25 = vld [vmem:[%s1 + $0x48] sm:$0xff]
    %v26 = vld [vmem:[%s1 + $0x50] sm:$0xff]
    %v27 = vld [vmem:[%s1 + $0x58] sm:$0xff]
    %v28 = vld [vmem:[%s1 + $0x60] sm:$0xff]
    %v29 = vld [vmem:[%s1 + $0x68] sm:$0xff]
    %v30 = vld [vmem:[%s1 + $0x70] sm:$0xff]
    %v31 = vld [vmem:[%s1 + $0x78] sm:$0xff]
    %v32 = vld [vmem:[%s1 + $0x80] sm:$0xff]
    %v33 = vld [vmem:[%s1 + $0x88] sm:$0xff]
    %v34 = vld [vmem:[%s1 + $0x90] sm:$0xff]
    %v35 = vld [vmem:[%s1 + $0x98] sm:$0xff]
    %v36 = vld [vmem:[%s1 + $0xa0] sm:$0xff]
    %v37 = vld [vmem:[%s1 + $0xa8] sm:$0xff]
    %v38 = vld [vmem:[%s1 + $0xb0] sm:$0xff]
    %v39 = vld [vmem:[%s1 + $0xb8] sm:$0xff]
    %v40 = vld [vmem:[%s1 + $0xc0] sm:$0xff]
    %v41 = vld [vmem:[%s1 + $0xc8] sm:$0xff]
    %v42 = vld [vmem:[%s1 + $0xd0] sm:$0xff]
    %v43 = vld [vmem:[%s1 + $0xd8] sm:$0xff]
    %v44 = vld [vmem:[%s1 + $0xe0] sm:$0xff]
    %v45 = vld [vmem:[%s1 + $0xe8] sm:$0xff]
    %v46 = vld [vmem:[%s1 + $0xf0] sm:$0xff]
    %v47 = vld [vmem:[%s1 + $0xf8] sm:$0xff]
    %v52 = vcombine.low %v12, %v13
    %v53 = vcombine.low %v14, %v15
    %v55 = vunpack.c.l.s4 1983009808
    %v56 = vunpack.c.0.s8 %v55
    %v57 = vlaneseq
    %v58 = vshrl.u32 %v57, 7
    %v59 = vsub.s32 %v56, %v58
    %v60 = vrot.slane %v52, %v59
    %v62 = vunpack.c.l.s4 1983009808
    %v63 = vunpack.c.0.s8 %v62
    %v64 = vlaneseq
    %v65 = vshrl.u32 %v64, 7
    %v66 = vsub.s32 %v63, %v65
    %v67 = vrot.slane %v53, %v66
    %v68 = vcombine.low %v60, %v67
    %v69 = vcombine.high %v60, %v67
    %72 = vmatprep.subr.mxu0 0.0
    %73 = vmatpush1.msra.mxu0 %v31
    %74 = vmatprep.subr.mxu0 0.0
    %75 = vmatpush1.msra.mxu0 %v30
    %76 = vmatprep.subr.mxu0 0.0
    %77 = vmatpush1.msra.mxu0 %v29
    %78 = vmatprep.subr.mxu0 0.0
    %79 = vmatpush1.msra.mxu0 %v28
    %80 = vmatprep.subr.mxu0 0.0
    %81 = vmatpush1.msra.mxu0 %v27
    %82 = vmatprep.subr.mxu0 0.0
    %83 = vmatpush1.msra.mxu0 %v26
    %84 = vmatprep.subr.mxu0 0.0
    %85 = vmatpush1.msra.mxu0 %v25
    %86 = vmatprep.subr.mxu0 0.0
    %87 = vmatpush1.msra.mxu0 %v24
    %88 = vmatprep.subr.mxu0 0.0
    %89 = vmatpush1.msra.mxu0 %v23
    %90 = vmatprep.subr.mxu0 0.0
    %91 = vmatpush1.msra.mxu0 %v22
    %92 = vmatprep.subr.mxu0 0.0
    %93 = vmatpush1.msra.mxu0 %v21
    %94 = vmatprep.subr.mxu0 0.0
    %95 = vmatpush1.msra.mxu0 %v20
    %96 = vmatprep.subr.mxu0 0.0
    %97 = vmatpush1.msra.mxu0 %v19
    %98 = vmatprep.subr.mxu0 0.0
    %99 = vmatpush1.msra.mxu0 %v18
    %100 = vmatprep.subr.mxu0 0.0
    %101 = vmatpush1.msra.mxu0 %v17
    %102 = vmatprep.subr.mxu0 0.0
    %103 = vmatpush1.msra.mxu0 %v16
    %104 = vmatprep.subr.mxu0 0.0
    %105 = vmatpush2.msra.mxu0 %v47
    %106 = vmatprep.subr.mxu0 0.0
    %107 = vmatpush2.msra.mxu0 %v46
    %108 = vmatprep.subr.mxu0 0.0
    %109 = vmatpush2.msra.mxu0 %v45
    %110 = vmatprep.subr.mxu0 0.0
    %111 = vmatpush2.msra.mxu0 %v44
    %112 = vmatprep.subr.mxu0 0.0
    %113 = vmatpush2.msra.mxu0 %v43
    %114 = vmatprep.subr.mxu0 0.0
    %115 = vmatpush2.msra.mxu0 %v42
    %116 = vmatprep.subr.mxu0 0.0
    %117 = vmatpush2.msra.mxu0 %v41
    %118 = vmatprep.subr.mxu0 0.0
    %119 = vmatpush2.msra.mxu0 %v40
    %120 = vmatprep.subr.mxu0 0.0
    %121 = vmatpush2.msra.mxu0 %v39
    %122 = vmatprep.subr.mxu0 0.0
    %123 = vmatpush2.msra.mxu0 %v38
    %124 = vmatprep.subr.mxu0 0.0
    %125 = vmatpush2.msra.mxu0 %v37
    %126 = vmatprep.subr.mxu0 0.0
    %127 = vmatpush2.msra.mxu0 %v36
    %128 = vmatprep.subr.mxu0 0.0
    %129 = vmatpush2.msra.mxu0 %v35
    %130 = vmatprep.subr.mxu0 0.0
    %131 = vmatpush2.msra.mxu0 %v34
    %132 = vmatprep.subr.mxu0 0.0
    %133 = vmatpush2.msra.mxu0 %v33
    %134 = vmatprep.subr.mxu0 0.0
    %135 = vmatpush2.msra.mxu0 %v32
    %136 = vmatprep.mubr.f32.mxu0 %v69
    %137 = vmatmul.mubr.f32.gmra.mxu0 %v68
    %v138 = vpop.f32.mrf.mxu0
    %v139 = vadd.f32 0.0, %v138
    %v140 = vpop.f32.mrf.mxu0
    %141 = vdwg.mxu0
    %vm142 = vcmask 261120
    %143 = vst.msk [vmem:[#allocation2] sm:$0xff] %vm142, %v139
    // Predicated region
    $region10: #{tpu_custom_call.1} parent=1 // pred_check
      _
    $region11: #{tpu_custom_call.1} parent=1 // pred_check_branch
      %145 = sbr.rel (0) target = $region13
    $region12: #{tpu_custom_call.1} parent=1 // pred_region
      %s147 = ssub.s32 128, 32
      %148 = vsyncadd [#allocation3], %s147
      %s149 = sshll.u32 [#allocation2], 4
      %s150 = int_to_ptr.vmem [resolvable:$true] %s149
      %155 = dma.vmem_to_hbm [thread:$0]  %s150, 32, %s2, [#allocation3], 32, 32, 2
    $region13: #{tpu_custom_call.1} parent=1 // pred_fallthru
      _
    // Predicated region
    $region14: #{tpu_custom_call.1} parent=1 // pred_check
      _
    $region15: #{tpu_custom_call.1} parent=1 // pred_check_branch
      %157 = sbr.rel (0) target = $region17
    $region16: #{tpu_custom_call.1} parent=1 // pred_region
      %158 = dma.done [#allocation3], 128
    $region17: #{tpu_custom_call.1} parent=1 // pred_fallthru
      _
    %159 = vsyncpa [#allocation3], 1

</llo_original>
